<compile_context>
chip_gen: v7x
topology: tpu7x:2x2x1
jax: 0.10.0
libtpu: 0.0.40
codegen_flags: <defaults>
</compile_context>

<pallas_src>
import jax
import jax.numpy as jnp
from jax.experimental import pallas as pl
from jax.experimental.pallas import tpu as pltpu


def _round_up(x, m):
    return ((x + m - 1) // m) * m


def ae_kernel(x_ref, w1_ref, b1_ref, w2_ref, b2_ref, o_ref):
    # x_ref:  (tm, D)   input row tile (D unpadded, == full feature dim)
    # w1_ref: (D, Hp)   fc1 weight (in, out), resident in VMEM
    # b1_ref: (1, Hp)   fc1 bias (zero-padded past H)
    # w2_ref: (Hp, D)   fc2 weight (in, out), rows >= H are zero (cancels pad)
    # b2_ref: (1, D)    fc2 bias
    # o_ref:  (tm, D)   output tile
    x = x_ref[...]                                              # keep caller dtype
    h = jnp.dot(x, w1_ref[...], preferred_element_type=jnp.float32)
    h = jax.nn.sigmoid(h + b1_ref[...])                         # f32, EUP exp
    y = jnp.dot(h.astype(w2_ref.dtype), w2_ref[...],
                preferred_element_type=jnp.float32) + b2_ref[...]
    o_ref[...] = y.astype(o_ref.dtype)


def ae_forward(x, w1, b1, w2, b2, *, tm=4096):
    """AE forward: x.reshape(-1, D) -> sigmoid(x@w1+b1) @ w2 + b2.

    w1: (D, H), b1: (H,), w2: (H, D), b2: (D,)  — (in, out) layout.
    Returns an array of shape (B, D) where B = x.size // D.
    """
    D = w1.shape[0]   # input_size
    H = w1.shape[1]   # nhidden
    assert w2.shape == (H, D)

    x0 = x.reshape(-1, D)          # free view; fed directly to the kernel (no pad copy)
    B = x0.shape[0]
    out_dtype = x0.dtype

    # Hidden dim padded to one full 128-lane vreg.  Invariant: padded b1 columns are
    # ZERO (-> sigmoid(0)=0.5) and the matching rows of padded w2 are ZERO, so the
    # padded hidden units contribute exactly nothing.  Weights are tiny + resident,
    # so this costs no HBM traffic.
    Hp = _round_up(max(H, 128), 128)

    w1_p = jnp.zeros((D, Hp), w1.dtype).at[:, :H].set(w1)
    b1_p = jnp.zeros((1, Hp), b1.dtype).at[0, :H].set(b1)
    w2_p = jnp.zeros((Hp, D), w2.dtype).at[:H, :].set(w2)
    b2_p = b2.reshape(1, D)

    # Row tile: big (amortize ~0.35us/step), but ensure >=2 grid steps for large
    # batches so v7x's two TensorCores both get work.  Last block may be ragged;
    # Pallas masks the out-of-bounds rows (only rows < B are ever written/returned).
    tm_eff = min(_round_up(tm, 8), _round_up(B, 8))
    if B >= 1024:
        tm_eff = min(tm_eff, _round_up(pl.cdiv(B, 2), 8))
    grid = pl.cdiv(B, tm_eff)

    itemsize = lambda a: a.dtype.itemsize
    w_bytes = (w1_p.size * itemsize(w1_p) + b1_p.size * itemsize(b1_p)
               + w2_p.size * itemsize(w2_p) + b2_p.size * itemsize(b2_p))
    bytes_accessed = (B * D * itemsize(x0) + w_bytes
                      + B * D * jnp.dtype(out_dtype).itemsize)
    cost = pl.CostEstimate(
        flops=4 * B * D * Hp,            # two matmuls: 2*B*D*Hp each (padded hidden)
        transcendentals=B * Hp,          # sigmoid
        bytes_accessed=int(bytes_accessed),
    )

    # VMEM footprint: double-buffered x/out tiles + resident weights (x2 for safety).
    vmem_bytes = (2 * tm_eff * D * itemsize(x0)
                  + 2 * tm_eff * D * jnp.dtype(out_dtype).itemsize
                  + 2 * w_bytes)
    cp_kwargs = dict(dimension_semantics=("parallel",))
    if vmem_bytes > (12 << 20):
        # 12 MiB threshold is conservative even for v5e's 16 MiB default scoped VMEM;
        # cap below v7x's 64 MiB physical VMEM.
        cp_kwargs["vmem_limit_bytes"] = int(min(vmem_bytes + (4 << 20), 60 << 20))

    out = pl.pallas_call(
        ae_kernel,
        out_shape=jax.ShapeDtypeStruct((B, D), out_dtype),
        grid_spec=pltpu.PrefetchScalarGridSpec(
            num_scalar_prefetch=0,
            grid=(grid,),
            in_specs=[
                pl.BlockSpec((tm_eff, D), lambda i: (i, 0)),   # x row tile
                pl.BlockSpec((D, Hp), lambda i: (0, 0)),       # w1 (resident)
                pl.BlockSpec((1, Hp), lambda i: (0, 0)),       # b1
                pl.BlockSpec((Hp, D), lambda i: (0, 0)),       # w2 (resident)
                pl.BlockSpec((1, D), lambda i: (0, 0)),        # b2
            ],
            out_specs=pl.BlockSpec((tm_eff, D), lambda i: (i, 0)),
        ),
        compiler_params=pltpu.CompilerParams(**cp_kwargs),
        cost_estimate=cost,
    )(x0, w1_p, b1_p, w2_p, b2_p)

    return out


def init_params(key, input_size, nhidden, dtype=jnp.float32):
    """Deterministic init mirroring nn.Linear's uniform(-1/sqrt(fan_in), 1/sqrt(fan_in))."""
    k1, k2, k3, k4 = jax.random.split(key, 4)
    lim1 = 1.0 / jnp.sqrt(jnp.asarray(input_size, dtype))
    lim2 = 1.0 / jnp.sqrt(jnp.asarray(nhidden, dtype))
    w1 = jax.random.uniform(k1, (input_size, nhidden), dtype, -lim1, lim1)
    b1 = jax.random.uniform(k2, (nhidden,), dtype, -lim1, lim1)
    w2 = jax.random.uniform(k3, (nhidden, input_size), dtype, -lim2, lim2)
    b2 = jax.random.uniform(k4, (input_size,), dtype, -lim2, lim2)
    return w1, b1, w2, b2


if __name__ == "__main__":
    key = jax.random.PRNGKey(0)
    kx, kp = jax.random.split(key)

    input_size = 64
    nhidden = 32

    # (2, 8, 64) input -> view(-1, 64) gives 16 rows of 64 features
    x = jax.random.normal(kx, (2, 8, 64), dtype=jnp.float32)
    w1, b1, w2, b2 = init_params(kp, input_size, nhidden)

    fwd = jax.jit(ae_forward)
    out = jax.block_until_ready(fwd(x, w1, b1, w2, b2))

    # reference check in plain JAX
    x0 = x.reshape(-1, input_size)
    ref = jax.nn.sigmoid(x0 @ w1 + b1) @ w2 + b2
    assert out.shape == (16, input_size)
    assert jnp.allclose(out, ref, atol=1e-4, rtol=1e-4), float(jnp.max(jnp.abs(out - ref)))

    print("KERNEL_OK")
</pallas_src>

<mosaic_0001>
module attributes {stable_mosaic.version = 11 : i64} {
  func.func @ae_kernel(%arg0: i32, %arg1: memref<16x64xf32, #tpu.memory_space<vmem>>, %arg2: memref<64x128xf32, #tpu.memory_space<vmem>>, %arg3: memref<1x128xf32, #tpu.memory_space<vmem>>, %arg4: memref<128x64xf32, #tpu.memory_space<vmem>>, %arg5: memref<1x64xf32, #tpu.memory_space<vmem>>, %arg6: memref<16x64xf32, #tpu.memory_space<vmem>>) attributes {dimension_semantics = [#tpu.dimension_semantics<parallel>], iteration_bounds = array<i64: 1>, scalar_prefetch = 0 : i64, scratch_operands = 0 : i64, tpu.core_type = #tpu.core_type<tc>, window_params = [{transform_indices = @transform_0, window_bounds = array<i64: 16, 64>}, {pipeline_mode = #tpu.pipeline_mode<synchronous>, transform_indices = @transform_1, window_bounds = array<i64: 64, 128>}, {pipeline_mode = #tpu.pipeline_mode<synchronous>, transform_indices = @transform_2, window_bounds = array<i64: 1, 128>}, {pipeline_mode = #tpu.pipeline_mode<synchronous>, transform_indices = @transform_3, window_bounds = array<i64: 128, 64>}, {pipeline_mode = #tpu.pipeline_mode<synchronous>, transform_indices = @transform_4, window_bounds = array<i64: 1, 64>}, {transform_indices = @transform_5, window_bounds = array<i64: 16, 64>}]} {
    %c0 = arith.constant 0 : index
    %c0_0 = arith.constant 0 : index
    %0 = vector.load %arg1[%c0, %c0_0] : memref<16x64xf32, #tpu.memory_space<vmem>>, vector<16x64xf32>
    %c0_1 = arith.constant 0 : index
    %c0_2 = arith.constant 0 : index
    %1 = vector.load %arg2[%c0_1, %c0_2] : memref<64x128xf32, #tpu.memory_space<vmem>>, vector<64x128xf32>
    %cst = arith.constant dense<0.000000e+00> : vector<16x128xf32>
    %2 = tpu.matmul %0, %1, %cst {dimension_numbers = #tpu.dot_dimension_numbers<[1], [0], [0], [1], [0, 0, 1, 1], [], []>} : vector<16x64xf32>, vector<64x128xf32>, vector<16x128xf32> -> vector<16x128xf32>
    %c0_3 = arith.constant 0 : index
    %c0_4 = arith.constant 0 : index
    %3 = vector.load %arg3[%c0_3, %c0_4] : memref<1x128xf32, #tpu.memory_space<vmem>>, vector<1x128xf32>
    %4 = vector.broadcast %3 : vector<1x128xf32> to vector<16x128xf32>
    %5 = arith.addf %2, %4 : vector<16x128xf32>
    %6 = arith.negf %5 : vector<16x128xf32>
    %7 = math.exp %6 : vector<16x128xf32>
    %cst_5 = arith.constant 1.000000e+00 : f32
    %8 = vector.broadcast %cst_5 : f32 to vector<16x128xf32>
    %9 = arith.addf %8, %7 : vector<16x128xf32>
    %10 = arith.divf %8, %9 : vector<16x128xf32>
    %c0_6 = arith.constant 0 : index
    %c0_7 = arith.constant 0 : index
    %11 = vector.load %arg4[%c0_6, %c0_7] : memref<128x64xf32, #tpu.memory_space<vmem>>, vector<128x64xf32>
    %cst_8 = arith.constant dense<0.000000e+00> : vector<16x64xf32>
    %12 = tpu.matmul %10, %11, %cst_8 {dimension_numbers = #tpu.dot_dimension_numbers<[1], [0], [0], [1], [0, 0, 1, 1], [], []>} : vector<16x128xf32>, vector<128x64xf32>, vector<16x64xf32> -> vector<16x64xf32>
    %c0_9 = arith.constant 0 : index
    %c0_10 = arith.constant 0 : index
    %13 = vector.load %arg5[%c0_9, %c0_10] : memref<1x64xf32, #tpu.memory_space<vmem>>, vector<1x64xf32>
    %14 = vector.broadcast %13 : vector<1x64xf32> to vector<16x64xf32>
    %15 = arith.addf %12, %14 : vector<16x64xf32>
    %c0_11 = arith.constant 0 : index
    %c0_12 = arith.constant 0 : index
    %16 = vector.load %arg6[%c0_11, %c0_12] : memref<16x64xf32, #tpu.memory_space<vmem>>, vector<16x64xf32>
    tpu.vector_store %arg6[%c0_11, %c0_12], %15 {strides = array<i32>} : memref<16x64xf32, #tpu.memory_space<vmem>>, vector<16x64xf32>,
    return
  }
  func.func @transform_0(%arg0: i32) -> (i32, i32) {
    %c0_i32 = arith.constant 0 : i32
    %c0_i32_0 = arith.constant 0 : i32
    return %arg0, %c0_i32 : i32, i32
  }
  func.func @transform_1(%arg0: i32) -> (i32, i32) {
    %c0_i32 = arith.constant 0 : i32
    %c0_i32_0 = arith.constant 0 : i32
    %c0_i32_1 = arith.constant 0 : i32
    return %c0_i32, %c0_i32_0 : i32, i32
  }
  func.func @transform_2(%arg0: i32) -> (i32, i32) {
    %c0_i32 = arith.constant 0 : i32
    %c0_i32_0 = arith.constant 0 : i32
    %c0_i32_1 = arith.constant 0 : i32
    return %c0_i32, %c0_i32_0 : i32, i32
  }
  func.func @transform_3(%arg0: i32) -> (i32, i32) {
    %c0_i32 = arith.constant 0 : i32
    %c0_i32_0 = arith.constant 0 : i32
    %c0_i32_1 = arith.constant 0 : i32
    return %c0_i32, %c0_i32_0 : i32, i32
  }
  func.func @transform_4(%arg0: i32) -> (i32, i32) {
    %c0_i32 = arith.constant 0 : i32
    %c0_i32_0 = arith.constant 0 : i32
    %c0_i32_1 = arith.constant 0 : i32
    return %c0_i32, %c0_i32_0 : i32, i32
  }
  func.func @transform_5(%arg0: i32) -> (i32, i32) {
    %c0_i32 = arith.constant 0 : i32
    %c0_i32_0 = arith.constant 0 : i32
    return %arg0, %c0_i32 : i32, i32
  }
}

</mosaic_0001>

<llo_original>
// kernel: ae_forward.1
$region0: #{ae_forward.1}
  #allocation0 [shape = 'u32[]', space=smem, size = 0x4, offset = 0x4, fixed_abs, tag = 'smem constant byte address 0x4 - core index']
  #allocation1 [shape = 'u32[144,128]{1,0:T(1,128)}', space=vmem, size = 0x12000, scoped, tag = 'internal scratch']
  %s0 = inlined_call_operand.vmem [shape: f32[16,64], index: 0, kind: input, shape index: {}]
  %s1 = inlined_call_operand.vmem [shape: f32[64,128], index: 1, kind: input, shape index: {}]
  %s2 = inlined_call_operand.vmem [shape: f32[1,128], index: 2, kind: input, shape index: {}]
  %s3 = inlined_call_operand.vmem [shape: f32[128,64], index: 3, kind: input, shape index: {}]
  %s4 = inlined_call_operand.vmem [shape: f32[1,64], index: 4, kind: input, shape index: {}]
  %s5 = inlined_call_operand.hbm [shape: f32[16,64], index: 5, kind: output, shape index: {}]
  %s6 = sld [smem:[#allocation0]]
  $region30: #{ae_forward.1} parent=0
    _
  %s8 = ssub.s32 1, %s6
  %s9 = scalar_select 0, %s8, %s6
  $region1: #{ae_forward.1} parent=0
    #allocation2 [shape = 'u8[8192]{0}', space=vmem, size = 0x2000, scoped, tag = 'output window, operand 0, single buffered']
    #allocation3 [shape = 's32[1]{0}', space=sflag, size = 0x4, scoped, tag = 'scoped memory for ae_forward.1']
    %10 = vsyncpa [#allocation3], 0
    // Predicated region
    $region2: #{ae_forward.1} parent=1 // pred_check
      _
    $region3: #{ae_forward.1} parent=1 // pred_check_branch
      %12 = sbr.rel (0) target = $region5
    $region4: #{ae_forward.1} parent=1 // pred_region
      _
    $region5: #{ae_forward.1} parent=1 // pred_fallthru
      _
    // Predicated region
    $region6: #{ae_forward.1} parent=1 // pred_check
      _
    $region7: #{ae_forward.1} parent=1 // pred_check_branch
      %14 = sbr.rel (0) target = $region9
    $region8: #{ae_forward.1} parent=1 // pred_region
      _
    $region9: #{ae_forward.1} parent=1 // pred_fallthru
      _
    // Predicated region
    $region10: #{ae_forward.1} parent=1 // pred_check
      _
    $region11: #{ae_forward.1} parent=1 // pred_check_branch
      %16 = sbr.rel (0) target = $region13
    $region12: #{ae_forward.1} parent=1 // pred_region
      _
    $region13: #{ae_forward.1} parent=1 // pred_fallthru
      _
    // Predicated region
    $region14: #{ae_forward.1} parent=1 // pred_check
      _
    $region15: #{ae_forward.1} parent=1 // pred_check_branch
      %18 = sbr.rel (0) target = $region17
    $region16: #{ae_forward.1} parent=1 // pred_region
      _
    $region17: #{ae_forward.1} parent=1 // pred_fallthru
      _
    // Predicated region
    $region18: #{ae_forward.1} parent=1 // pred_check
      _
    $region19: #{ae_forward.1} parent=1 // pred_check_branch
      %20 = sbr.rel (0) target = $region21
    $region20: #{ae_forward.1} parent=1 // pred_region
      _
    $region21: #{ae_forward.1} parent=1 // pred_fallthru
      _
    %v21 = vld [vmem:[%s0] sm:$0xff]
    %v22 = vld [vmem:[%s0 + $0x8] sm:$0xff]
    %v23 = vld [vmem:[%s1] sm:$0xff]
    %v24 = vld [vmem:[%s1 + $0x8] sm:$0xff]
    %v25 = vld [vmem:[%s1 + $0x10] sm:$0xff]
    %v26 = vld [vmem:[%s1 + $0x18] sm:$0xff]
    %v27 = vld [vmem:[%s1 + $0x20] sm:$0xff]
    %v28 = vld [vmem:[%s1 + $0x28] sm:$0xff]
    %v29 = vld [vmem:[%s1 + $0x30] sm:$0xff]
    %v30 = vld [vmem:[%s1 + $0x38] sm:$0xff]
    %v31 = vld [vmem:[%s2] sm:$0x1]
    %v33 = vlaneseq
    %v34 = vshrl.u32 %v33, 7
    %v35 = vsub.s32 0, %v34
    %v36 = vrot.slane %v31, %v35
    %vm38 = vcmask 523264
    %v40 = vsel %vm38, %v21, 0
    %v43 = vsel %vm38, %v22, 0
    %45 = vmatprep.subr.mxu0 0.0
    %46 = vmatpush1.msra.mxu0 %v23
    %47 = vmatprep.subr.mxu0 0.0
    %48 = vmatpush1.msra.mxu0 %v24
    %49 = vmatprep.subr.mxu0 0.0
    %50 = vmatpush1.msra.mxu0 %v25
    %51 = vmatprep.subr.mxu0 0.0
    %52 = vmatpush1.msra.mxu0 %v26
    %53 = vmatprep.subr.mxu0 0.0
    %54 = vmatpush1.msra.mxu0 %v27
    %55 = vmatprep.subr.mxu0 0.0
    %56 = vmatpush1.msra.mxu0 %v28
    %57 = vmatprep.subr.mxu0 0.0
    %58 = vmatpush1.msra.mxu0 %v29
    %59 = vmatprep.subr.mxu0 0.0
    %60 = vmatpush1.msra.mxu0 %v30
    %61 = vmatprep.subr.mxu0 0.0
    %62 = vmatpush1.msra.mxu0 0.0
    %63 = vmatprep.subr.mxu0 0.0
    %64 = vmatpush1.msra.mxu0 0.0
    %65 = vmatprep.subr.mxu0 0.0
    %66 = vmatpush1.msra.mxu0 0.0
    %67 = vmatprep.subr.mxu0 0.0
    %68 = vmatpush1.msra.mxu0 0.0
    %69 = vmatprep.subr.mxu0 0.0
    %70 = vmatpush1.msra.mxu0 0.0
    %71 = vmatprep.subr.mxu0 0.0
    %72 = vmatpush1.msra.mxu0 0.0
    %73 = vmatprep.subr.mxu0 0.0
    %74 = vmatpush1.msra.mxu0 0.0
    %75 = vmatprep.subr.mxu0 0.0
    %76 = vmatpush1.msra.mxu0 0.0
    %77 = vmatprep.subr.mxu0 0.0
    %78 = vmatpush1.msra.mxu0 0.0
    %79 = vmatprep.subr.mxu0 0.0
    %80 = vmatpush1.msra.mxu0 0.0
    %81 = vmatprep.subr.mxu0 0.0
    %82 = vmatpush1.msra.mxu0 0.0
    %83 = vmatprep.subr.mxu0 0.0
    %84 = vmatpush1.msra.mxu0 0.0
    %85 = vmatprep.subr.mxu0 0.0
    %86 = vmatpush1.msra.mxu0 0.0
    %87 = vmatprep.subr.mxu0 0.0
    %88 = vmatpush1.msra.mxu0 0.0
    %89 = vmatprep.subr.mxu0 0.0
    %90 = vmatpush1.msra.mxu0 0.0
    %91 = vmatprep.subr.mxu0 0.0
    %92 = vmatpush1.msra.mxu0 0.0
    %93 = vmatprep.subr.mxu0 0.0
    %94 = vmatpush1.msra.mxu0 0.0
    %95 = vmatprep.subr.mxu0 0.0
    %96 = vmatpush1.msra.mxu0 0.0
    %97 = vmatprep.subr.mxu0 0.0
    %98 = vmatpush1.msra.mxu0 0.0
    %99 = vmatprep.subr.mxu0 0.0
    %100 = vmatpush1.msra.mxu0 0.0
    %101 = vmatprep.subr.mxu0 0.0
    %102 = vmatpush1.msra.mxu0 0.0
    %103 = vmatprep.subr.mxu0 0.0
    %104 = vmatpush1.msra.mxu0 0.0
    %105 = vmatprep.subr.mxu0 0.0
    %106 = vmatpush1.msra.mxu0 0.0
    %107 = vmatprep.subr.mxu0 0.0
    %108 = vmatpush1.msra.mxu0 0.0
    %109 = vmatprep.mubr.f32.mxu0 0.0
    %110 = vmatmul.mubr.f32.gmra.mrb[0].mxu0 %v40
    %v111 = vpop.f32.mrb[0].mxu0
    %v112 = vadd.f32 %v36, %v111
    %v113 = vpop.f32.mrb[0].mxu0
    %114 = vmatprep.mubr.f32.mxu0 0.0
    %115 = vmatmul.mubr.f32.gmra.mrb[0].mxu0 %v43
    %v116 = vpop.f32.mrb[0].mxu0
    %v117 = vadd.f32 %v36, %v116
    %v118 = vpop.f32.mrb[0].mxu0
    %119 = vdwg.mxu0
    %v120 = vxor.u32 %v112, 2147483648
    %v121 = vxor.u32 %v117, 2147483648
    %v122 = vmul.f32 %v120, 1.442695
    %v123 = vpow.pop %v122
    %v124 = vmul.f32 %v121, 1.442695
    %v125 = vpow.pop %v124
    %v126 = vadd.f32 %v123, 1.0
    %v127 = vadd.f32 %v125, 1.0
    %v128 = vrcp.pop %v126
    %v129 = vmul.f32 1.0, %v128
    %v130 = vrcp.pop %v127
    %v131 = vmul.f32 1.0, %v130
    %v132 = vld [vmem:[%s3] sm:$0xff]
    %v133 = vld [vmem:[%s3 + $0x8] sm:$0xff]
    %v134 = vld [vmem:[%s3 + $0x10] sm:$0xff]
    %v135 = vld [vmem:[%s3 + $0x18] sm:$0xff]
    %v136 = vld [vmem:[%s3 + $0x20] sm:$0xff]
    %v137 = vld [vmem:[%s3 + $0x28] sm:$0xff]
    %v138 = vld [vmem:[%s3 + $0x30] sm:$0xff]
    %v139 = vld [vmem:[%s3 + $0x38] sm:$0xff]
    %v140 = vld [vmem:[%s3 + $0x40] sm:$0xff]
    %v141 = vld [vmem:[%s3 + $0x48] sm:$0xff]
    %v142 = vld [vmem:[%s3 + $0x50] sm:$0xff]
    %v143 = vld [vmem:[%s3 + $0x58] sm:$0xff]
    %v144 = vld [vmem:[%s3 + $0x60] sm:$0xff]
    %v145 = vld [vmem:[%s3 + $0x68] sm:$0xff]
    %v146 = vld [vmem:[%s3 + $0x70] sm:$0xff]
    %v147 = vld [vmem:[%s3 + $0x78] sm:$0xff]
    %v148 = vld [vmem:[%s4] sm:$0x1]
    %v150 = vlaneseq
    %v151 = vshrl.u32 %v150, 7
    %v152 = vsub.s32 0, %v151
    %v153 = vrot.slane %v148, %v152
    %155 = vmatprep.subr.mxu0 0.0
    %156 = vmatpush1.msra.mxu0 %v132
    %157 = vmatprep.subr.mxu0 0.0
    %158 = vmatpush1.msra.mxu0 %v133
    %159 = vmatprep.subr.mxu0 0.0
    %160 = vmatpush1.msra.mxu0 %v134
    %161 = vmatprep.subr.mxu0 0.0
    %162 = vmatpush1.msra.mxu0 %v135
    %163 = vmatprep.subr.mxu0 0.0
    %164 = vmatpush1.msra.mxu0 %v136
    %165 = vmatprep.subr.mxu0 0.0
    %166 = vmatpush1.msra.mxu0 %v137
    %167 = vmatprep.subr.mxu0 0.0
    %168 = vmatpush1.msra.mxu0 %v138
    %169 = vmatprep.subr.mxu0 0.0
    %170 = vmatpush1.msra.mxu0 %v139
    %171 = vmatprep.subr.mxu0 0.0
    %172 = vmatpush1.msra.mxu0 %v140
    %173 = vmatprep.subr.mxu0 0.0
    %174 = vmatpush1.msra.mxu0 %v141
    %175 = vmatprep.subr.mxu0 0.0
    %176 = vmatpush1.msra.mxu0 %v142
    %177 = vmatprep.subr.mxu0 0.0
    %178 = vmatpush1.msra.mxu0 %v143
    %179 = vmatprep.subr.mxu0 0.0
    %180 = vmatpush1.msra.mxu0 %v144
    %181 = vmatprep.subr.mxu0 0.0
    %182 = vmatpush1.msra.mxu0 %v145
    %183 = vmatprep.subr.mxu0 0.0
    %184 = vmatpush1.msra.mxu0 %v146
    %185 = vmatprep.subr.mxu0 0.0
    %186 = vmatpush1.msra.mxu0 %v147
    %187 = vmatprep.subr.mxu0 0.0
    %188 = vmatpush1.msra.mxu0 0.0
    %189 = vmatprep.subr.mxu0 0.0
    %190 = vmatpush1.msra.mxu0 0.0
    %191 = vmatprep.subr.mxu0 0.0
    %192 = vmatpush1.msra.mxu0 0.0
    %193 = vmatprep.subr.mxu0 0.0
    %194 = vmatpush1.msra.mxu0 0.0
    %195 = vmatprep.subr.mxu0 0.0
    %196 = vmatpush1.msra.mxu0 0.0
    %197 = vmatprep.subr.mxu0 0.0
    %198 = vmatpush1.msra.mxu0 0.0
    %199 = vmatprep.subr.mxu0 0.0
    %200 = vmatpush1.msra.mxu0 0.0
    %201 = vmatprep.subr.mxu0 0.0
    %202 = vmatpush1.msra.mxu0 0.0
    %203 = vmatprep.subr.mxu0 0.0
    %204 = vmatpush1.msra.mxu0 0.0
    %205 = vmatprep.subr.mxu0 0.0
    %206 = vmatpush1.msra.mxu0 0.0
    %207 = vmatprep.subr.mxu0 0.0
    %208 = vmatpush1.msra.mxu0 0.0
    %209 = vmatprep.subr.mxu0 0.0
    %210 = vmatpush1.msra.mxu0 0.0
    %211 = vmatprep.subr.mxu0 0.0
    %212 = vmatpush1.msra.mxu0 0.0
    %213 = vmatprep.subr.mxu0 0.0
    %214 = vmatpush1.msra.mxu0 0.0
    %215 = vmatprep.subr.mxu0 0.0
    %216 = vmatpush1.msra.mxu0 0.0
    %217 = vmatprep.subr.mxu0 0.0
    %218 = vmatpush1.msra.mxu0 0.0
    %219 = vmatprep.mubr.f32.mxu0 0.0
    %220 = vmatmul.mubr.f32.gmra.mrb[0].mxu0 %v129
    %v221 = vpop.f32.mrb[0].mxu0
    %v222 = vadd.f32 %v153, %v221
    %v223 = vpop.f32.mrb[0].mxu0
    %224 = vmatprep.mubr.f32.mxu0 0.0
    %225 = vmatmul.mubr.f32.gmra.mrb[0].mxu0 %v131
    %v226 = vpop.f32.mrb[0].mxu0
    %v227 = vadd.f32 %v153, %v226
    %v228 = vpop.f32.mrb[0].mxu0
    %229 = vdwg.mxu0
    %230 = vst.msk [vmem:[#allocation2] sm:$0xff] %vm38, %v222
    %231 = vst.msk [vmem:[#allocation2 + $0x8] sm:$0xff] %vm38, %v227
    // Predicated region
    $region22: #{ae_forward.1} parent=1 // pred_check
      _
    $region23: #{ae_forward.1} parent=1 // pred_check_branch
      %233 = sbr.rel (0) target = $region25
    $region24: #{ae_forward.1} parent=1 // pred_region
      %s235 = ssub.s32 256, 256
      %236 = vsyncadd [#allocation3], %s235
      %s237 = sshll.u32 [#allocation2], 4
      %s238 = int_to_ptr.vmem [resolvable:$true] %s237
      %243 = dma.vmem_to_hbm [thread:$0]  %s238, 256, %s5, [#allocation3], 128, 128, 8
    $region25: #{ae_forward.1} parent=1 // pred_fallthru
      _
    // Predicated region
    $region26: #{ae_forward.1} parent=1 // pred_check
      _
    $region27: #{ae_forward.1} parent=1 // pred_check_branch
      %245 = sbr.rel (0) target = $region29
    $region28: #{ae_forward.1} parent=1 // pred_region
      %246 = dma.done [#allocation3], 256
    $region29: #{ae_forward.1} parent=1 // pred_fallthru
      _
    %247 = vsyncpa [#allocation3], 1

</llo_original>
